<compile_context>
chip_gen: v6e
topology: v6e:2x2x1
jax: 0.10.0
libtpu: 0.0.40
codegen_flags: <defaults>
</compile_context>

<pallas_src>
import functools

import jax
import jax.numpy as jnp
from jax.experimental import pallas as pl
from jax.experimental.pallas import tpu as pltpu


# --------------------------------------------------------------------------- helpers
def _pick_tile(m, cap):
    """Largest multiple-of-8 divisor of m that is <= cap (falls back to m)."""
    best = m
    t = 8
    while t <= min(m, cap):
        if m % t == 0:
            best = t
        t += 8
    return best


# ------------------------------------------------------------------ 1x1 conv = matmul
def _mm_bias_kernel(x_ref, w_ref, b_ref, o_ref, *, relu):
    acc = jnp.dot(x_ref[...], w_ref[...], preferred_element_type=jnp.float32)
    acc = acc + b_ref[...]
    if relu:
        acc = jnp.maximum(acc, 0.0)
    o_ref[...] = acc.astype(o_ref.dtype)


def matmul_bias(x2d, w, b, relu=False, tile_cap=256):
    m, cin = x2d.shape
    cout = w.shape[1]
    tm = _pick_tile(m, tile_cap)
    return pl.pallas_call(
        functools.partial(_mm_bias_kernel, relu=relu),
        out_shape=jax.ShapeDtypeStruct((m, cout), x2d.dtype),
        grid=(m // tm,),
        in_specs=[
            pl.BlockSpec((tm, cin), lambda i: (i, 0)),
            pl.BlockSpec((cin, cout), lambda i: (0, 0)),
            pl.BlockSpec((1, cout), lambda i: (0, 0)),
        ],
        out_specs=pl.BlockSpec((tm, cout), lambda i: (i, 0)),
        compiler_params=pltpu.CompilerParams(dimension_semantics=("parallel",)),
    )(x2d, w, b)


# ----------------------------------------------------------------------- maxpool 2x2
def _maxpool2x2_kernel(x_ref, o_ref):
    # x_ref: (1, 2, W, C) — two consecutive input rows;  o_ref: (1, 1, W//2, C)
    _, _, wo, _ = o_ref.shape
    w = x_ref.shape[2]
    m = jnp.maximum(x_ref[0, 0], x_ref[0, 1]).astype(jnp.float32)     # (W, C): H-pooled
    # W-pooling via two 0/1 selection matmuls (exact; uses the otherwise-idle MXU,
    # avoids strided/relayout vector ops and extra HBM copies).
    row = jax.lax.broadcasted_iota(jnp.int32, (wo, w), 0)
    col = jax.lax.broadcasted_iota(jnp.int32, (wo, w), 1)
    sel_even = (col == 2 * row).astype(jnp.float32)
    sel_odd = (col == 2 * row + 1).astype(jnp.float32)
    pooled = jnp.maximum(
        jnp.dot(sel_even, m, preferred_element_type=jnp.float32),
        jnp.dot(sel_odd, m, preferred_element_type=jnp.float32))
    o_ref[0, 0] = pooled.astype(o_ref.dtype)


def maxpool2x2(x_nhwc):
    n, h, w, c = x_nhwc.shape
    ho, wo = h // 2, w // 2
    return pl.pallas_call(
        _maxpool2x2_kernel,
        out_shape=jax.ShapeDtypeStruct((n, ho, wo, c), x_nhwc.dtype),
        grid=(n, ho),
        in_specs=[pl.BlockSpec((1, 2, w, c), lambda b, i: (b, i, 0, 0))],
        out_specs=pl.BlockSpec((1, 1, wo, c), lambda b, i: (b, i, 0, 0)),
        compiler_params=pltpu.CompilerParams(
            dimension_semantics=("parallel", "parallel")),
    )(x_nhwc)


# -------------------------------------------------------------- 3x3 conv (VGG branch)
def _conv3x3_kernel(x_ref, w_ref, b_ref, o_ref, *, apply_relu):
    # x_ref: (1, H+2, W+2, Cin) pre-padded; w_ref: (9, Cin, Cout); b_ref: (1, Cout)
    _, h, w, cout = o_ref.shape
    cin = x_ref.shape[-1]
    acc = jnp.zeros((h * w, cout), jnp.float32)            # register-resident accumulator
    for t in range(9):
        ky, kx = t // 3, t % 3
        patch = x_ref[0, pl.ds(ky, h), pl.ds(kx, w), :]     # (H, W, Cin)
        acc = acc + jnp.dot(patch.reshape(h * w, cin), w_ref[t],
                            preferred_element_type=jnp.float32)
    acc = acc + b_ref[...]
    if apply_relu:
        acc = jnp.maximum(acc, 0.0)
    o_ref[...] = acc.reshape(1, h, w, cout).astype(o_ref.dtype)


def conv3x3(x_nhwc, w9, b, apply_relu):
    n, h, w, cin = x_nhwc.shape
    cout = w9.shape[-1]
    # TODO(synk): the 1-pixel halo is produced with a jnp.pad glue op; for large inputs it
    # should be folded into the BlockSpec/index_map to save one HBM pass.
    xp = jnp.pad(x_nhwc, ((0, 0), (1, 1), (1, 1), (0, 0)))
    return pl.pallas_call(
        functools.partial(_conv3x3_kernel, apply_relu=apply_relu),
        out_shape=jax.ShapeDtypeStruct((n, h, w, cout), x_nhwc.dtype),
        grid=(n,),
        in_specs=[
            pl.BlockSpec((1, h + 2, w + 2, cin), lambda i: (i, 0, 0, 0)),
            pl.BlockSpec((9, cin, cout), lambda i: (0, 0, 0)),
            pl.BlockSpec((1, cout), lambda i: (0, 0)),
        ],
        out_specs=pl.BlockSpec((1, h, w, cout), lambda i: (i, 0, 0, 0)),
        compiler_params=pltpu.CompilerParams(dimension_semantics=("parallel",)),
    )(xp, w9, b)


# -------------------------------------- fused attention (f/softmax/top-k/y/W/residual)
def _attention_kernel(theta_ref, phi_ref, g_ref, w_ref, b_ref, x_ref, o_ref, *, k):
    theta = theta_ref[0]                                    # (Tq, Ci)
    phi = phi_ref[0]                                        # (Np, Ci)
    # f[n, m] = sum_c theta[n, c] * phi[m, c]   (theta @ phi^T on the MXU)
    f = jax.lax.dot_general(theta, phi, (((1,), (1,)), ((), ())),
                            preferred_element_type=jnp.float32)         # (Tq, Np)
    np_ = f.shape[-1]
    # full softmax over the (sub-sampled) key axis
    p = jnp.exp(f - jnp.max(f, axis=-1, keepdims=True))
    p = p / jnp.sum(p, axis=-1, keepdims=True)
    # top-k scatter, faithful to `zeros.scatter_(2, idx, softmax(f))`:
    #   sparse[n, idx[n, j]] = p[n, j]  for j = 0..k-1   (src column j, NOT column idx[n, j])
    col = jax.lax.broadcasted_iota(jnp.int32, f.shape, 1)
    work = f
    sparse = jnp.zeros_like(p)
    for j in range(k):                                      # k = 10, statically unrolled
        mval = jnp.max(work, axis=-1, keepdims=True)
        hit = work == mval
        first = jnp.min(jnp.where(hit, col, np_), axis=-1, keepdims=True)
        onehot = col == first                               # j-th largest key (lowest index on ties)
        pj = jnp.sum(jnp.where(col == j, p, 0.0), axis=-1, keepdims=True)
        sparse = jnp.where(onehot, pj, sparse)
        work = jnp.where(onehot, -jnp.inf, work)
    # y = sparse @ [g | g_vgg];  z = y @ W + b + 0.1 * x   (W 1x1 conv + residual fused)
    y = jnp.dot(sparse, g_ref[0], preferred_element_type=jnp.float32)   # (Tq, 2*Ci)
    z = jnp.dot(y, w_ref[...], preferred_element_type=jnp.float32)
    z = z + b_ref[...] + 0.1 * x_ref[0]
    o_ref[0] = z.astype(o_ref.dtype)


def attention_block(theta, phi, g_cat, w_w, b_w, x_flat, k=10, tq_cap=128):
    b, n, ci = theta.shape
    np_ = phi.shape[1]
    c2 = g_cat.shape[-1]
    cin = x_flat.shape[-1]
    tq = _pick_tile(n, tq_cap)
    flops = 2 * b * n * (np_ * ci + np_ * c2 + c2 * cin)
    bytes_accessed = 4 * (theta.size + phi.size + g_cat.size + w_w.size
                          + b_w.size + x_flat.size + b * n * cin)
    return pl.pallas_call(
        functools.partial(_attention_kernel, k=k),
        out_shape=jax.ShapeDtypeStruct((b, n, cin), x_flat.dtype),
        grid=(b, n // tq),
        in_specs=[
            pl.BlockSpec((1, tq, ci), lambda i, q: (i, q, 0)),
            pl.BlockSpec((1, np_, ci), lambda i, q: (i, 0, 0)),
            pl.BlockSpec((1, np_, c2), lambda i, q: (i, 0, 0)),
            pl.BlockSpec((c2, cin), lambda i, q: (0, 0)),
            pl.BlockSpec((1, cin), lambda i, q: (0, 0)),
            pl.BlockSpec((1, tq, cin), lambda i, q: (i, q, 0)),
        ],
        out_specs=pl.BlockSpec((1, tq, cin), lambda i, q: (i, q, 0)),
        compiler_params=pltpu.CompilerParams(
            dimension_semantics=("parallel", "parallel")),
        cost_estimate=pl.CostEstimate(flops=flops, transcendentals=b * n * np_,
                                      bytes_accessed=bytes_accessed),
    )(theta, phi, g_cat, w_w, b_w, x_flat)


# ----------------------------------------------------------------------- parameters
def init_params(key, in_channels=64):
    assert in_channels == 64, "forward() hardwires inter=32 (g2rgb) and VGG-64 (g2f)"
    inter = in_channels // 2                                 # 32
    ks = jax.random.split(key, 12)

    def w(kk, shape, scale=0.1):
        return scale * jax.random.normal(kk, shape, jnp.float32)

    p = {}
    p["w_g"] = w(ks[0], (in_channels, inter));  p["b_g"] = jnp.zeros((1, inter), jnp.float32)
    p["w_theta"] = w(ks[1], (in_channels, inter)); p["b_theta"] = w(ks[2], (1, inter))
    p["w_phi"] = w(ks[3], (in_channels, inter));   p["b_phi"] = w(ks[4], (1, inter))
    p["w_g2rgb"] = w(ks[5], (inter, 3));        p["b_g2rgb"] = jnp.zeros((1, 3), jnp.float32)
    p["w_g2f"] = w(ks[6], (64, inter));         p["b_g2f"] = jnp.zeros((1, inter), jnp.float32)
    p["w_W"] = w(ks[7], (2 * inter, in_channels))
    p["b_W"] = jnp.zeros((1, in_channels), jnp.float32)
    # VGG('12') synthetic weights: conv1_1 (3->64) + ReLU, conv1_2 (64->64) + ReLU  (HWIO)
    p["w_vgg1"] = w(ks[8], (3, 3, 3, 64));   p["b_vgg1"] = w(ks[9], (1, 64))
    p["w_vgg2"] = w(ks[10], (3, 3, 64, 64)); p["b_vgg2"] = w(ks[11], (1, 64))
    # Hoisted, lane-dense fused theta|phi|g projection and tap-major VGG weights.
    p["w_tpg"] = jnp.concatenate([p["w_theta"], p["w_phi"], p["w_g"]], axis=1)
    p["b_tpg"] = jnp.concatenate([p["b_theta"], p["b_phi"], p["b_g"]], axis=1)
    p["w_vgg1_k"] = p["w_vgg1"].reshape(9, 3, 64)
    p["w_vgg2_k"] = p["w_vgg2"].reshape(9, 64, 64)
    return p


# -------------------------------------------------------------------- module forward
def nonlocal_forward(params, x_nchw, k=10):
    b, cin, h, w = x_nchw.shape
    ci = params["w_theta"].shape[1]                          # inter_channels (32)
    n, hp, wp = h * w, h // 2, w // 2
    np_ = hp * wp
    x_nhwc = jnp.transpose(x_nchw, (0, 2, 3, 1))             # layout glue: NCHW -> NHWC
    xf = x_nhwc.reshape(b * n, cin)

    # one fused 1x1-conv matmul produces theta | phi | g (x read from HBM once)
    tpg = matmul_bias(xf, params["w_tpg"], params["b_tpg"]).reshape(b, h, w, 3 * ci)
    theta = tpg[..., :ci].reshape(b, n, ci)
    phi_p = maxpool2x2(tpg[..., ci:2 * ci]).reshape(b, np_, ci)
    g_p = maxpool2x2(tpg[..., 2 * ci:])                      # (B, H/2, W/2, Ci)

    # VGG('12') branch on g (quarter resolution): g2rgb -> conv/ReLU -> conv/ReLU -> g2f
    # (sub_mean is never applied in VGG.forward, so it is not applied here either)
    rgb = matmul_bias(g_p.reshape(b * np_, ci), params["w_g2rgb"], params["b_g2rgb"])
    v = conv3x3(rgb.reshape(b, hp, wp, 3), params["w_vgg1_k"], params["b_vgg1"], True)
    v = conv3x3(v, params["w_vgg2_k"], params["b_vgg2"], True)
    g_vgg = matmul_bias(v.reshape(b * np_, 64), params["w_g2f"], params["b_g2f"])
    g_cat = jnp.concatenate([g_p.reshape(b, np_, ci), g_vgg.reshape(b, np_, ci)], axis=-1)

    # fused attention: f -> softmax -> top-k scatter -> y -> W(1x1) -> + 0.1 * x
    z = attention_block(theta, phi_p, g_cat, params["w_W"], params["b_W"],
                        x_nhwc.reshape(b, n, cin), k=k)
    z = jnp.transpose(z.reshape(b, h, w, cin), (0, 3, 1, 2))
    return z, None, None


# -------------------------------------------------------------- pure-JAX reference
def nonlocal_reference(params, x_nchw, k=10):
    b, cin, h, w = x_nchw.shape
    ci = params["w_theta"].shape[1]
    n, hp, wp = h * w, h // 2, w // 2
    np_ = hp * wp
    prec = jax.lax.Precision.HIGHEST
    x = jnp.transpose(x_nchw, (0, 2, 3, 1))
    xf = x.reshape(b, n, cin)

    theta = jnp.dot(xf, params["w_theta"], precision=prec) + params["b_theta"]
    phi = (jnp.dot(xf, params["w_phi"], precision=prec) + params["b_phi"]).reshape(b, h, w, ci)
    g = (jnp.dot(xf, params["w_g"], precision=prec) + params["b_g"]).reshape(b, h, w, ci)

    def pool(t):
        return jax.lax.reduce_window(t, -jnp.inf, jax.lax.max,
                                     (1, 2, 2, 1), (1, 2, 2, 1), "VALID")

    phi_p = pool(phi).reshape(b, np_, ci)
    g_p = pool(g).reshape(b, np_, ci)

    rgb = jnp.dot(g_p, params["w_g2rgb"], precision=prec) + params["b_g2rgb"]
    v = rgb.reshape(b, hp, wp, 3)
    for wk, bk in (("w_vgg1", "b_vgg1"), ("w_vgg2", "b_vgg2")):
        v = jax.lax.conv_general_dilated(
            v, params[wk], (1, 1), "SAME",
            dimension_numbers=("NHWC", "HWIO", "NHWC"), precision=prec)
        v = jnp.maximum(v + params[bk].reshape(1, 1, 1, -1), 0.0)
    g_vgg = jnp.dot(v.reshape(b, np_, 64), params["w_g2f"], precision=prec) + params["b_g2f"]

    f = jnp.einsum("bnc,bmc->bnm", theta, phi_p, precision=prec)
    p_full = jax.nn.softmax(f, axis=-1)
    _, idx = jax.lax.top_k(f, k)
    onehot = jax.nn.one_hot(idx, np_, dtype=f.dtype)                    # (B, N, k, Np)
    sparse = jnp.einsum("bnkm,bnk->bnm", onehot, p_full[..., :k], precision=prec)
    g_cat = jnp.concatenate([g_p, g_vgg], axis=-1)
    y = jnp.einsum("bnm,bmc->bnc", sparse, g_cat, precision=prec)
    z = jnp.dot(y, params["w_W"], precision=prec) + params["b_W"] + 0.1 * xf
    return jnp.transpose(z.reshape(b, h, w, cin), (0, 3, 1, 2))


# --------------------------------------------------------------------------- main
if __name__ == "__main__":
    key = jax.random.PRNGKey(0)
    k_x, k_p = jax.random.split(key)
    B, CIN, H, W = 2, 64, 16, 16          # module pins in_channels=64 (inter=32), 2-D data
    x = jax.random.normal(k_x, (B, CIN, H, W), jnp.float32)
    params = init_params(k_p, in_channels=CIN)

    z, _, _ = nonlocal_forward(params, x)
    z = jax.block_until_ready(z)
    assert z.shape == (B, CIN, H, W), z.shape

    ref = nonlocal_reference(params, x)
    max_err = float(jnp.max(jnp.abs(z - ref)))
    assert bool(jnp.allclose(z, ref, rtol=2e-2, atol=2e-2)), max_err
    print("KERNEL_OK")
</pallas_src>

<mosaic_0001>
module attributes {stable_mosaic.version = 11 : i64} {
  func.func @_mm_bias_kernel(%arg0: i32, %arg1: memref<256x64xf32, #tpu.memory_space<vmem>>, %arg2: memref<64x96xf32, #tpu.memory_space<vmem>>, %arg3: memref<1x96xf32, #tpu.memory_space<vmem>>, %arg4: memref<256x96xf32, #tpu.memory_space<vmem>>) attributes {dimension_semantics = [#tpu.dimension_semantics<parallel>], iteration_bounds = array<i64: 2>, scalar_prefetch = 0 : i64, scratch_operands = 0 : i64, tpu.core_type = #tpu.core_type<tc>, window_params = [{transform_indices = @transform_0, window_bounds = array<i64: 256, 64>}, {pipeline_mode = #tpu.pipeline_mode<synchronous>, transform_indices = @transform_1, window_bounds = array<i64: 64, 96>}, {pipeline_mode = #tpu.pipeline_mode<synchronous>, transform_indices = @transform_2, window_bounds = array<i64: 1, 96>}, {transform_indices = @transform_3, window_bounds = array<i64: 256, 96>}]} {
    %c0 = arith.constant 0 : index
    %c0_0 = arith.constant 0 : index
    %0 = vector.load %arg1[%c0, %c0_0] : memref<256x64xf32, #tpu.memory_space<vmem>>, vector<256x64xf32>
    %c0_1 = arith.constant 0 : index
    %c0_2 = arith.constant 0 : index
    %1 = vector.load %arg2[%c0_1, %c0_2] : memref<64x96xf32, #tpu.memory_space<vmem>>, vector<64x96xf32>
    %cst = arith.constant dense<0.000000e+00> : vector<256x96xf32>
    %2 = tpu.matmul %0, %1, %cst {dimension_numbers = #tpu.dot_dimension_numbers<[1], [0], [0], [1], [0, 0, 1, 1], [], []>} : vector<256x64xf32>, vector<64x96xf32>, vector<256x96xf32> -> vector<256x96xf32>
    %c0_3 = arith.constant 0 : index
    %c0_4 = arith.constant 0 : index
    %3 = vector.load %arg3[%c0_3, %c0_4] : memref<1x96xf32, #tpu.memory_space<vmem>>, vector<1x96xf32>
    %4 = vector.broadcast %3 : vector<1x96xf32> to vector<256x96xf32>
    %5 = arith.addf %2, %4 : vector<256x96xf32>
    %c0_5 = arith.constant 0 : index
    %c0_6 = arith.constant 0 : index
    %6 = vector.load %arg4[%c0_5, %c0_6] : memref<256x96xf32, #tpu.memory_space<vmem>>, vector<256x96xf32>
    tpu.vector_store %arg4[%c0_5, %c0_6], %5 {strides = array<i32>} : memref<256x96xf32, #tpu.memory_space<vmem>>, vector<256x96xf32>,
    return
  }
  func.func @transform_0(%arg0: i32) -> (i32, i32) {
    %c0_i32 = arith.constant 0 : i32
    %c0_i32_0 = arith.constant 0 : i32
    return %arg0, %c0_i32 : i32, i32
  }
  func.func @transform_1(%arg0: i32) -> (i32, i32) {
    %c0_i32 = arith.constant 0 : i32
    %c0_i32_0 = arith.constant 0 : i32
    %c0_i32_1 = arith.constant 0 : i32
    return %c0_i32, %c0_i32_0 : i32, i32
  }
  func.func @transform_2(%arg0: i32) -> (i32, i32) {
    %c0_i32 = arith.constant 0 : i32
    %c0_i32_0 = arith.constant 0 : i32
    %c0_i32_1 = arith.constant 0 : i32
    return %c0_i32, %c0_i32_0 : i32, i32
  }
  func.func @transform_3(%arg0: i32) -> (i32, i32) {
    %c0_i32 = arith.constant 0 : i32
    %c0_i32_0 = arith.constant 0 : i32
    return %arg0, %c0_i32 : i32, i32
  }
}

</mosaic_0001>

<llo_original>
// kernel: tpu_custom_call.1
$region0: #{tpu_custom_call.1}
  #allocation0 [shape = 'u32[]', space=smem, size = 0x4, offset = 0x4, fixed_abs, tag = 'smem constant byte address 0x4 - core index']
  #allocation1 [shape = 'u32[144,128]{1,0:T(1,128)}', space=vmem, size = 0x12000, scoped, tag = 'internal scratch']
  %s0 = inlined_call_operand.vmem [shape: f32[512,64], index: 0, kind: input, shape index: {}]
  %s1 = inlined_call_operand.vmem [shape: f32[64,96], index: 1, kind: input, shape index: {}]
  %s2 = inlined_call_operand.vmem [shape: f32[1,96], index: 2, kind: input, shape index: {}]
  %s3 = inlined_call_operand.vmem [shape: f32[512,96], index: 3, kind: output, shape index: {}]
  %s4 = sld [smem:[#allocation0]]
  $region45: #{tpu_custom_call.1} parent=0
    _
  %s6 = ssub.s32 1, %s4
  %s7 = scalar_select 0, %s6, %s4
  loop: start=0, step=1, limit=4
  $region2: #{tpu_custom_call.1} parent=0 // loop_pre_header
    _
  $region3: #{tpu_custom_call.1} parent=0 // loop_header
    %s9 = sphi 0, %s13
    %p10 = scmp.ge.s32.totalorder %s9, 4
    %s19 = sphi 0, %s21
    %s22 = sphi 0, %s19
    %s23 = sphi 0, %s22
    %s39 = sphi 0, %s23
    %s43 = sphi 0, %s43
    %s45 = sphi 0, %s43
    %s46 = sphi 0, %s45
    %s60 = sphi 0, %s46
    %s64 = sphi 0, %s64
    %s66 = sphi 0, %s64
    %s67 = sphi 0, %s66
    %s81 = sphi 0, %s67
    %s87 = sphi 0, %s89
    %s90 = sphi 0, %s87
    %s91 = sphi 0, %s90
    %s107 = sphi 0, %s91
  $region4: #{tpu_custom_call.1} parent=0 // loop_header_branch
    %12 = sbr.rel (%p10) target = $region8
  $region5: #{tpu_custom_call.1} parent=0 // loop_body
    %s14 = ssub.s32 %s9, 1
    %s15 = ssub.s32 %s9, 2
    %s16 = sadd.s32 %s9, 1
    %s17 = ssub.s32 %s9, %s16
    %p18 = scmp.eq.s32.totalorder %s17, 0
    %s20 = sadd.s32 %s19, 1
    %s21 = scalar_select %p18, %s19, %s20
    %p24 = pneg %p18
    %p25 = scmp.eq.s32.totalorder %s9, 1
    %p26 = por %p24, %p25
    %p27 = scmp.ne.s32.totalorder %s19, %s22
    %p28 = scmp.eq.s32.totalorder %s9, 0
    %p29 = por %p27, %p28
    %p30 = scmp.ne.s32.totalorder %s19, %s22
    %p31 = scmp.eq.s32.totalorder %s14, 1
    %p32 = por %p30, %p31
    %p33 = scmp.ne.s32.totalorder %s22, %s23
    %p34 = scmp.eq.s32.totalorder %s14, 0
    %p35 = por %p33, %p34
    %p36 = scmp.ne.s32.totalorder %s22, %s23
    %p37 = scmp.eq.s32.totalorder %s15, 1
    %p38 = por %p36, %p37
    %p40 = scmp.ne.s32.totalorder %s23, %s39
    %p41 = scmp.eq.s32.totalorder %s15, 0
    %p42 = por %p40, %p41
    %s44 = sadd.s32 %s43, 1
    %p47 = scmp.eq.s32.totalorder %s9, 1
    %p48 = scmp.ne.s32.totalorder %s43, %s45
    %p49 = scmp.eq.s32.totalorder %s9, 0
    %p50 = por %p48, %p49
    %p51 = scmp.ne.s32.totalorder %s43, %s45
    %p52 = scmp.eq.s32.totalorder %s14, 1
    %p53 = por %p51, %p52
    %p54 = scmp.ne.s32.totalorder %s45, %s46
    %p55 = scmp.eq.s32.totalorder %s14, 0
    %p56 = por %p54, %p55
    %p57 = scmp.ne.s32.totalorder %s45, %s46
    %p58 = scmp.eq.s32.totalorder %s15, 1
    %p59 = por %p57, %p58
    %p61 = scmp.ne.s32.totalorder %s46, %s60
    %p62 = scmp.eq.s32.totalorder %s15, 0
    %p63 = por %p61, %p62
    %s65 = sadd.s32 %s64, 1
    %p68 = scmp.eq.s32.totalorder %s9, 1
    %p69 = scmp.ne.s32.totalorder %s64, %s66
    %p70 = scmp.eq.s32.totalorder %s9, 0
    %p71 = por %p69, %p70
    %p72 = scmp.ne.s32.totalorder %s64, %s66
    %p73 = scmp.eq.s32.totalorder %s14, 1
    %p74 = por %p72, %p73
    %p75 = scmp.ne.s32.totalorder %s66, %s67
    %p76 = scmp.eq.s32.totalorder %s14, 0
    %p77 = por %p75, %p76
    %p78 = scmp.ne.s32.totalorder %s66, %s67
    %p79 = scmp.eq.s32.totalorder %s15, 1
    %p80 = por %p78, %p79
    %p82 = scmp.ne.s32.totalorder %s67, %s81
    %p83 = scmp.eq.s32.totalorder %s15, 0
    %p84 = por %p82, %p83
    %s85 = ssub.s32 %s9, %s16
    %p86 = scmp.eq.s32.totalorder %s85, 0
    %s88 = sadd.s32 %s87, 1
    %s89 = scalar_select %p86, %s87, %s88
    %p92 = pneg %p86
    %p93 = scmp.eq.s32.totalorder %s9, 1
    %p94 = por %p92, %p93
    %p95 = scmp.ne.s32.totalorder %s87, %s90
    %p96 = scmp.eq.s32.totalorder %s9, 0
    %p97 = por %p95, %p96
    %p98 = scmp.ne.s32.totalorder %s87, %s90
    %p99 = scmp.eq.s32.totalorder %s14, 1
    %p100 = por %p98, %p99
    %p101 = scmp.ne.s32.totalorder %s90, %s91
    %p102 = scmp.eq.s32.totalorder %s14, 0
    %p103 = por %p101, %p102
    %p104 = scmp.ne.s32.totalorder %s90, %s91
    %p105 = scmp.eq.s32.totalorder %s15, 1
    %p106 = por %p104, %p105
    %p108 = scmp.ne.s32.totalorder %s91, %s107
    %p109 = scmp.eq.s32.totalorder %s15, 0
    %p110 = por %p108, %p109
    %p111 = scmp.le.s32.totalorder 1, %s9
    %p112 = scmp.lt.s32.totalorder %s9, 3
    %p113 = pnand %p111, %p112
    %p114 = pneg %p113
    // Predicated region
    $region9: #{tpu_custom_call.1} parent=5 // pred_check
      _
    $region10: #{tpu_custom_call.1} parent=5 // pred_check_branch
      %116 = sbr.rel (%p113) target = $region12
    $region11: #{tpu_custom_call.1} parent=5 // pred_region
      %s117 = ssub.s32 %s9, 1
      // Predicated region
      $region13: #{tpu_custom_call.1} parent=11 // pred_check
        %p118 = pneg %p56
      $region14: #{tpu_custom_call.1} parent=11 // pred_check_branch
        %120 = sbr.rel (%p118) target = $region16
      $region15: #{tpu_custom_call.1} parent=11 // pred_region
        _
      $region16: #{tpu_custom_call.1} parent=11 // pred_fallthru
        _
      // Predicated region
      $region17: #{tpu_custom_call.1} parent=11 // pred_check
        %p121 = pneg %p77
      $region18: #{tpu_custom_call.1} parent=11 // pred_check_branch
        %123 = sbr.rel (%p121) target = $region20
      $region19: #{tpu_custom_call.1} parent=11 // pred_region
        _
      $region20: #{tpu_custom_call.1} parent=11 // pred_fallthru
        _
    $region12: #{tpu_custom_call.1} parent=5 // pred_fallthru
      _
    %p124 = scmp.lt.s32.totalorder %s9, 2
    // Predicated region
    $region21: #{tpu_custom_call.1} parent=5 // pred_check
      %p125 = pneg %p124
    $region22: #{tpu_custom_call.1} parent=5 // pred_check_branch
      %127 = sbr.rel (%p125) target = $region24
    $region23: #{tpu_custom_call.1} parent=5 // pred_region
      // Predicated region
      $region25: #{tpu_custom_call.1} parent=23 // pred_check
        %p128 = pneg %p29
      $region26: #{tpu_custom_call.1} parent=23 // pred_check_branch
        %130 = sbr.rel (%p128) target = $region28
      $region27: #{tpu_custom_call.1} parent=23 // pred_region
        %s131 = smul.u32 32, %s9
        %p132 = scmp.lt.s32.totalorder %s131, 63
        %s133 = scalar_select %p132, %s131, 63
        %s134 = smul.addr %s133, 8
        %s135 = scalar_lea.vmem %s0, %s134
        %s136 = smul.u32 32, %s9
      $region28: #{tpu_custom_call.1} parent=23 // pred_fallthru
        _
    $region24: #{tpu_custom_call.1} parent=5 // pred_fallthru
      _
    %p137 = scmp.le.s32.totalorder 1, %s9
    %p138 = scmp.lt.s32.totalorder %s9, 3
    %p139 = pnand %p137, %p138
    %p140 = pneg %p139
    // Predicated region
    $region29: #{tpu_custom_call.1} parent=5 // pred_check
      _
    $region30: #{tpu_custom_call.1} parent=5 // pred_check_branch
      %142 = sbr.rel (%p139) target = $region32
    $region31: #{tpu_custom_call.1} parent=5 // pred_region
      %s143 = ssub.s32 %s9, 1
      %s144 = smul.u32 32, %s14
      %p145 = scmp.lt.s32.totalorder %s144, 63
      %s146 = scalar_select %p145, %s144, 63
      %s147 = smul.addr %s146, 8
      %s148 = scalar_lea.vmem %s0, %s147
      %p149 = pneg %p35
      %p150 = pneg %p32
      %p151 = pneg %p56
      %p152 = pneg %p53
      %p153 = pneg %p77
      %p154 = pneg %p74
      %p155 = pneg %p103
      %p156 = pneg %p100
      %s157 = smul.u32 32, %s14
      %p158 = scmp.lt.s32.totalorder %s157, 63
      %s159 = scalar_select %p158, %s157, 63
      %s160 = smul.addr %s159, 8
      %s161 = scalar_lea.vmem %s3, %s160
      %s162 = smul.u32 32, %s14
      %p163 = scmp.lt.s32.totalorder %s162, 63
      %s164 = scalar_select %p163, %s162, 63
      %s165 = smul.addr %s164, 8
      %s166 = scalar_lea.vmem %s0, %s165
      %s167 = smul.u32 32, %s14
      %s168 = smul.u32 32, %s14
      %p169 = scmp.lt.s32.totalorder %s168, 63
      %s170 = scalar_select %p169, %s168, 63
      %s171 = smul.addr %s170, 8
      %s172 = scalar_lea.vmem %s3, %s171
      %s173 = smul.u32 32, %s14
      %v174 = vld [vmem:[%s166] sm:$0xff]
      %v175 = vld [vmem:[%s166 + $0x8] sm:$0xff]
      %v176 = vld [vmem:[%s166 + $0x10] sm:$0xff]
      %v177 = vld [vmem:[%s166 + $0x18] sm:$0xff]
      %v178 = vld [vmem:[%s166 + $0x20] sm:$0xff]
      %v179 = vld [vmem:[%s166 + $0x28] sm:$0xff]
      %v180 = vld [vmem:[%s166 + $0x30] sm:$0xff]
      %v181 = vld [vmem:[%s166 + $0x38] sm:$0xff]
      %v182 = vld [vmem:[%s166 + $0x40] sm:$0xff]
      %v183 = vld [vmem:[%s166 + $0x48] sm:$0xff]
      %v184 = vld [vmem:[%s166 + $0x50] sm:$0xff]
      %v185 = vld [vmem:[%s166 + $0x58] sm:$0xff]
      %v186 = vld [vmem:[%s166 + $0x60] sm:$0xff]
      %v187 = vld [vmem:[%s166 + $0x68] sm:$0xff]
      %v188 = vld [vmem:[%s166 + $0x70] sm:$0xff]
      %v189 = vld [vmem:[%s166 + $0x78] sm:$0xff]
      %v190 = vld [vmem:[%s166 + $0x80] sm:$0xff]
      %v191 = vld [vmem:[%s166 + $0x88] sm:$0xff]
      %v192 = vld [vmem:[%s166 + $0x90] sm:$0xff]
      %v193 = vld [vmem:[%s166 + $0x98] sm:$0xff]
      %v194 = vld [vmem:[%s166 + $0xa0] sm:$0xff]
      %v195 = vld [vmem:[%s166 + $0xa8] sm:$0xff]
      %v196 = vld [vmem:[%s166 + $0xb0] sm:$0xff]
      %v197 = vld [vmem:[%s166 + $0xb8] sm:$0xff]
      %v198 = vld [vmem:[%s166 + $0xc0] sm:$0xff]
      %v199 = vld [vmem:[%s166 + $0xc8] sm:$0xff]
      %v200 = vld [vmem:[%s166 + $0xd0] sm:$0xff]
      %v201 = vld [vmem:[%s166 + $0xd8] sm:$0xff]
      %v202 = vld [vmem:[%s166 + $0xe0] sm:$0xff]
      %v203 = vld [vmem:[%s166 + $0xe8] sm:$0xff]
      %v204 = vld [vmem:[%s166 + $0xf0] sm:$0xff]
      %v205 = vld [vmem:[%s166 + $0xf8] sm:$0xff]
      %v206 = vld [vmem:[%s1] sm:$0xff]
      %v207 = vld [vmem:[%s1 + $0x8] sm:$0xff]
      %v208 = vld [vmem:[%s1 + $0x10] sm:$0xff]
      %v209 = vld [vmem:[%s1 + $0x18] sm:$0xff]
      %v210 = vld [vmem:[%s1 + $0x20] sm:$0xff]
      %v211 = vld [vmem:[%s1 + $0x28] sm:$0xff]
      %v212 = vld [vmem:[%s1 + $0x30] sm:$0xff]
      %v213 = vld [vmem:[%s1 + $0x38] sm:$0xff]
      %v214 = vld [vmem:[%s2] sm:$0x1]
      %v216 = vlaneseq
      %v217 = vshrl.u32 %v216, 7
      %v218 = vsub.s32 0, %v217
      %v219 = vrot.slane %v214, %v218
      %vm221 = vcmask 523264
      %v223 = vsel %vm221, %v174, 0
      %v226 = vsel %vm221, %v175, 0
      %v229 = vsel %vm221, %v176, 0
      %v232 = vsel %vm221, %v177, 0
      %v235 = vsel %vm221, %v178, 0
      %v238 = vsel %vm221, %v179, 0
      %v241 = vsel %vm221, %v180, 0
      %v244 = vsel %vm221, %v181, 0
      %v247 = vsel %vm221, %v182, 0
      %v250 = vsel %vm221, %v183, 0
      %v253 = vsel %vm221, %v184, 0
      %v256 = vsel %vm221, %v185, 0
      %v259 = vsel %vm221, %v186, 0
      %v262 = vsel %vm221, %v187, 0
      %v265 = vsel %vm221, %v188, 0
      %v268 = vsel %vm221, %v189, 0
      %v271 = vsel %vm221, %v190, 0
      %v274 = vsel %vm221, %v191, 0
      %v277 = vsel %vm221, %v192, 0
      %v280 = vsel %vm221, %v193, 0
      %v283 = vsel %vm221, %v194, 0
      %v286 = vsel %vm221, %v195, 0
      %v289 = vsel %vm221, %v196, 0
      %v292 = vsel %vm221, %v197, 0
      %v295 = vsel %vm221, %v198, 0
      %v298 = vsel %vm221, %v199, 0
      %v301 = vsel %vm221, %v200, 0
      %v304 = vsel %vm221, %v201, 0
      %v307 = vsel %vm221, %v202, 0
      %v310 = vsel %vm221, %v203, 0
      %v313 = vsel %vm221, %v204, 0
      %v316 = vsel %vm221, %v205, 0
      %318 = vmatprep.subr.mxu0 0.0
      %319 = vmatpush1.msra.mxu0 0.0
      %320 = vmatprep.subr.mxu0 0.0
      %321 = vmatpush1.msra.mxu0 0.0
      %322 = vmatprep.subr.mxu0 0.0
      %323 = vmatpush1.msra.mxu0 0.0
      %324 = vmatprep.subr.mxu0 0.0
      %325 = vmatpush1.msra.mxu0 0.0
      %326 = vmatprep.subr.mxu0 0.0
      %327 = vmatpush1.msra.mxu0 0.0
      %328 = vmatprep.subr.mxu0 0.0
      %329 = vmatpush1.msra.mxu0 0.0
      %330 = vmatprep.subr.mxu0 0.0
      %331 = vmatpush1.msra.mxu0 0.0
      %332 = vmatprep.subr.mxu0 0.0
      %333 = vmatpush1.msra.mxu0 0.0
      %334 = vmatprep.subr.mxu0 0.0
      %335 = vmatpush1.msra.mxu0 %v213
      %336 = vmatprep.subr.mxu0 0.0
      %337 = vmatpush1.msra.mxu0 %v212
      %338 = vmatprep.subr.mxu0 0.0
      %339 = vmatpush1.msra.mxu0 %v211
      %340 = vmatprep.subr.mxu0 0.0
      %341 = vmatpush1.msra.mxu0 %v210
      %342 = vmatprep.subr.mxu0 0.0
      %343 = vmatpush1.msra.mxu0 %v209
      %344 = vmatprep.subr.mxu0 0.0
      %345 = vmatpush1.msra.mxu0 %v208
      %346 = vmatprep.subr.mxu0 0.0
      %347 = vmatpush1.msra.mxu0 %v207
      %348 = vmatprep.subr.mxu0 0.0
      %349 = vmatpush1.msra.mxu0 %v206
      %350 = vmatprep.subr.mxu0 0.0
      %351 = vmatpush2.msra.mxu0 0.0
      %352 = vmatprep.subr.mxu0 0.0
      %353 = vmatpush2.msra.mxu0 0.0
      %354 = vmatprep.subr.mxu0 0.0
      %355 = vmatpush2.msra.mxu0 0.0
      %356 = vmatprep.subr.mxu0 0.0
      %357 = vmatpush2.msra.mxu0 0.0
      %358 = vmatprep.subr.mxu0 0.0
      %359 = vmatpush2.msra.mxu0 0.0
      %360 = vmatprep.subr.mxu0 0.0
      %361 = vmatpush2.msra.mxu0 0.0
      %362 = vmatprep.subr.mxu0 0.0
      %363 = vmatpush2.msra.mxu0 0.0
      %364 = vmatprep.subr.mxu0 0.0
      %365 = vmatpush2.msra.mxu0 0.0
      %366 = vmatprep.subr.mxu0 0.0
      %367 = vmatpush2.msra.mxu0 0.0
      %368 = vmatprep.subr.mxu0 0.0
      %369 = vmatpush2.msra.mxu0 0.0
      %370 = vmatprep.subr.mxu0 0.0
      %371 = vmatpush2.msra.mxu0 0.0
      %372 = vmatprep.subr.mxu0 0.0
      %373 = vmatpush2.msra.mxu0 0.0
      %374 = vmatprep.subr.mxu0 0.0
      %375 = vmatpush2.msra.mxu0 0.0
      %376 = vmatprep.subr.mxu0 0.0
      %377 = vmatpush2.msra.mxu0 0.0
      %378 = vmatprep.subr.mxu0 0.0
      %379 = vmatpush2.msra.mxu0 0.0
      %380 = vmatprep.subr.mxu0 0.0
      %381 = vmatpush2.msra.mxu0 0.0
      %382 = vmatprep.mubr.f32.mxu0 0.0
      %383 = vmatmul.mubr.f32.gmra.mxu0 %v223
      %v384 = vpop.f32.mrf.mxu0
      %v385 = vadd.f32 %v219, %v384
      %v386 = vpop.f32.mrf.mxu0
      %387 = vmatprep.mubr.f32.mxu0 0.0
      %388 = vmatmul.mubr.f32.gmra.mxu0 %v226
      %v389 = vpop.f32.mrf.mxu0
      %v390 = vadd.f32 %v219, %v389
      %v391 = vpop.f32.mrf.mxu0
      %392 = vmatprep.mubr.f32.mxu0 0.0
      %393 = vmatmul.mubr.f32.gmra.mxu0 %v229
      %v394 = vpop.f32.mrf.mxu0
      %v395 = vadd.f32 %v219, %v394
      %v396 = vpop.f32.mrf.mxu0
      %397 = vmatprep.mubr.f32.mxu0 0.0
      %398 = vmatmul.mubr.f32.gmra.mxu0 %v232
      %v399 = vpop.f32.mrf.mxu0
      %v400 = vadd.f32 %v219, %v399
      %v401 = vpop.f32.mrf.mxu0
      %402 = vmatprep.mubr.f32.mxu0 0.0
      %403 = vmatmul.mubr.f32.gmra.mxu0 %v235
      %v404 = vpop.f32.mrf.mxu0
      %v405 = vadd.f32 %v219, %v404
      %v406 = vpop.f32.mrf.mxu0
      %407 = vmatprep.mubr.f32.mxu0 0.0
      %408 = vmatmul.mubr.f32.gmra.mxu0 %v238
      %v409 = vpop.f32.mrf.mxu0
      %v410 = vadd.f32 %v219, %v409
      %v411 = vpop.f32.mrf.mxu0
      %412 = vmatprep.mubr.f32.mxu0 0.0
      %413 = vmatmul.mubr.f32.gmra.mxu0 %v241
      %v414 = vpop.f32.mrf.mxu0
      %v415 = vadd.f32 %v219, %v414
      %v416 = vpop.f32.mrf.mxu0
      %417 = vmatprep.mubr.f32.mxu0 0.0
      %418 = vmatmul.mubr.f32.gmra.mxu0 %v244
      %v419 = vpop.f32.mrf.mxu0
      %v420 = vadd.f32 %v219, %v419
      %v421 = vpop.f32.mrf.mxu0
      %422 = vmatprep.mubr.f32.mxu0 0.0
      %423 = vmatmul.mubr.f32.gmra.mxu0 %v247
      %v424 = vpop.f32.mrf.mxu0
      %v425 = vadd.f32 %v219, %v424
      %v426 = vpop.f32.mrf.mxu0
      %427 = vmatprep.mubr.f32.mxu0 0.0
      %428 = vmatmul.mubr.f32.gmra.mxu0 %v250
      %v429 = vpop.f32.mrf.mxu0
      %v430 = vadd.f32 %v219, %v429
      %v431 = vpop.f32.mrf.mxu0
      %432 = vmatprep.mubr.f32.mxu0 0.0
      %433 = vmatmul.mubr.f32.gmra.mxu0 %v253
      %v434 = vpop.f32.mrf.mxu0
      %v435 = vadd.f32 %v219, %v434
      %v436 = vpop.f32.mrf.mxu0
      %437 = vmatprep.mubr.f32.mxu0 0.0
      %438 = vmatmul.mubr.f32.gmra.mxu0 %v256
      %v439 = vpop.f32.mrf.mxu0
      %v440 = vadd.f32 %v219, %v439
      %v441 = vpop.f32.mrf.mxu0
      %442 = vmatprep.mubr.f32.mxu0 0.0
      %443 = vmatmul.mubr.f32.gmra.mxu0 %v259
      %v444 = vpop.f32.mrf.mxu0
      %v445 = vadd.f32 %v219, %v444
      %v446 = vpop.f32.mrf.mxu0
      %447 = vmatprep.mubr.f32.mxu0 0.0
      %448 = vmatmul.mubr.f32.gmra.mxu0 %v262
      %v449 = vpop.f32.mrf.mxu0
      %v450 = vadd.f32 %v219, %v449
      %v451 = vpop.f32.mrf.mxu0
      %452 = vmatprep.mubr.f32.mxu0 0.0
      %453 = vmatmul.mubr.f32.gmra.mxu0 %v265
      %v454 = vpop.f32.mrf.mxu0
      %v455 = vadd.f32 %v219, %v454
      %v456 = vpop.f32.mrf.mxu0
      %457 = vmatprep.mubr.f32.mxu0 0.0
      %458 = vmatmul.mubr.f32.gmra.mxu0 %v268
      %v459 = vpop.f32.mrf.mxu0
      %v460 = vadd.f32 %v219, %v459
      %v461 = vpop.f32.mrf.mxu0
      %462 = vmatprep.mubr.f32.mxu0 0.0
      %463 = vmatmul.mubr.f32.gmra.mxu0 %v271
      %v464 = vpop.f32.mrf.mxu0
      %v465 = vadd.f32 %v219, %v464
      %v466 = vpop.f32.mrf.mxu0
      %467 = vmatprep.mubr.f32.mxu0 0.0
      %468 = vmatmul.mubr.f32.gmra.mxu0 %v274
      %v469 = vpop.f32.mrf.mxu0
      %v470 = vadd.f32 %v219, %v469
      %v471 = vpop.f32.mrf.mxu0
      %472 = vmatprep.mubr.f32.mxu0 0.0
      %473 = vmatmul.mubr.f32.gmra.mxu0 %v277
      %v474 = vpop.f32.mrf.mxu0
      %v475 = vadd.f32 %v219, %v474
      %v476 = vpop.f32.mrf.mxu0
      %477 = vmatprep.mubr.f32.mxu0 0.0
      %478 = vmatmul.mubr.f32.gmra.mxu0 %v280
      %v479 = vpop.f32.mrf.mxu0
      %v480 = vadd.f32 %v219, %v479
      %v481 = vpop.f32.mrf.mxu0
      %482 = vmatprep.mubr.f32.mxu0 0.0
      %483 = vmatmul.mubr.f32.gmra.mxu0 %v283
      %v484 = vpop.f32.mrf.mxu0
      %v485 = vadd.f32 %v219, %v484
      %v486 = vpop.f32.mrf.mxu0
      %487 = vmatprep.mubr.f32.mxu0 0.0
      %488 = vmatmul.mubr.f32.gmra.mxu0 %v286
      %v489 = vpop.f32.mrf.mxu0
      %v490 = vadd.f32 %v219, %v489
      %v491 = vpop.f32.mrf.mxu0
      %492 = vmatprep.mubr.f32.mxu0 0.0
      %493 = vmatmul.mubr.f32.gmra.mxu0 %v289
      %v494 = vpop.f32.mrf.mxu0
      %v495 = vadd.f32 %v219, %v494
      %v496 = vpop.f32.mrf.mxu0
      %497 = vmatprep.mubr.f32.mxu0 0.0
      %498 = vmatmul.mubr.f32.gmra.mxu0 %v292
      %v499 = vpop.f32.mrf.mxu0
      %v500 = vadd.f32 %v219, %v499
      %v501 = vpop.f32.mrf.mxu0
      %502 = vmatprep.mubr.f32.mxu0 0.0
      %503 = vmatmul.mubr.f32.gmra.mxu0 %v295
      %v504 = vpop.f32.mrf.mxu0
      %v505 = vadd.f32 %v219, %v504
      %v506 = vpop.f32.mrf.mxu0
      %507 = vmatprep.mubr.f32.mxu0 0.0
      %508 = vmatmul.mubr.f32.gmra.mxu0 %v298
      %v509 = vpop.f32.mrf.mxu0
      %v510 = vadd.f32 %v219, %v509
      %v511 = vpop.f32.mrf.mxu0
      %512 = vmatprep.mubr.f32.mxu0 0.0
      %513 = vmatmul.mubr.f32.gmra.mxu0 %v301
      %v514 = vpop.f32.mrf.mxu0
      %v515 = vadd.f32 %v219, %v514
      %v516 = vpop.f32.mrf.mxu0
      %517 = vmatprep.mubr.f32.mxu0 0.0
      %518 = vmatmul.mubr.f32.gmra.mxu0 %v304
      %v519 = vpop.f32.mrf.mxu0
      %v520 = vadd.f32 %v219, %v519
      %v521 = vpop.f32.mrf.mxu0
      %522 = vmatprep.mubr.f32.mxu0 0.0
      %523 = vmatmul.mubr.f32.gmra.mxu0 %v307
      %v524 = vpop.f32.mrf.mxu0
      %v525 = vadd.f32 %v219, %v524
      %v526 = vpop.f32.mrf.mxu0
      %527 = vmatprep.mubr.f32.mxu0 0.0
      %528 = vmatmul.mubr.f32.gmra.mxu0 %v310
      %v529 = vpop.f32.mrf.mxu0
      %v530 = vadd.f32 %v219, %v529
      %v531 = vpop.f32.mrf.mxu0
      %532 = vmatprep.mubr.f32.mxu0 0.0
      %533 = vmatmul.mubr.f32.gmra.mxu0 %v313
      %v534 = vpop.f32.mrf.mxu0
      %v535 = vadd.f32 %v219, %v534
      %v536 = vpop.f32.mrf.mxu0
      %537 = vmatprep.mubr.f32.mxu0 0.0
      %538 = vmatmul.mubr.f32.gmra.mxu0 %v316
      %v539 = vpop.f32.mrf.mxu0
      %v540 = vadd.f32 %v219, %v539
      %v541 = vpop.f32.mrf.mxu0
      %542 = vdwg.mxu0
      %vm543 = vcmask 785408
      %544 = vst.msk [vmem:[%s172] sm:$0xff] %vm543, %v385
      %545 = vst.msk [vmem:[%s172 + $0x8] sm:$0xff] %vm543, %v390
      %546 = vst.msk [vmem:[%s172 + $0x10] sm:$0xff] %vm543, %v395
      %547 = vst.msk [vmem:[%s172 + $0x18] sm:$0xff] %vm543, %v400
      %548 = vst.msk [vmem:[%s172 + $0x20] sm:$0xff] %vm543, %v405
      %549 = vst.msk [vmem:[%s172 + $0x28] sm:$0xff] %vm543, %v410
      %550 = vst.msk [vmem:[%s172 + $0x30] sm:$0xff] %vm543, %v415
      %551 = vst.msk [vmem:[%s172 + $0x38] sm:$0xff] %vm543, %v420
      %552 = vst.msk [vmem:[%s172 + $0x40] sm:$0xff] %vm543, %v425
      %553 = vst.msk [vmem:[%s172 + $0x48] sm:$0xff] %vm543, %v430
      %554 = vst.msk [vmem:[%s172 + $0x50] sm:$0xff] %vm543, %v435
      %555 = vst.msk [vmem:[%s172 + $0x58] sm:$0xff] %vm543, %v440
      %556 = vst.msk [vmem:[%s172 + $0x60] sm:$0xff] %vm543, %v445
      %557 = vst.msk [vmem:[%s172 + $0x68] sm:$0xff] %vm543, %v450
      %558 = vst.msk [vmem:[%s172 + $0x70] sm:$0xff] %vm543, %v455
      %559 = vst.msk [vmem:[%s172 + $0x78] sm:$0xff] %vm543, %v460
      %560 = vst.msk [vmem:[%s172 + $0x80] sm:$0xff] %vm543, %v465
      %561 = vst.msk [vmem:[%s172 + $0x88] sm:$0xff] %vm543, %v470
      %562 = vst.msk [vmem:[%s172 + $0x90] sm:$0xff] %vm543, %v475
      %563 = vst.msk [vmem:[%s172 + $0x98] sm:$0xff] %vm543, %v480
      %564 = vst.msk [vmem:[%s172 + $0xa0] sm:$0xff] %vm543, %v485
      %565 = vst.msk [vmem:[%s172 + $0xa8] sm:$0xff] %vm543, %v490
      %566 = vst.msk [vmem:[%s172 + $0xb0] sm:$0xff] %vm543, %v495
      %567 = vst.msk [vmem:[%s172 + $0xb8] sm:$0xff] %vm543, %v500
      %568 = vst.msk [vmem:[%s172 + $0xc0] sm:$0xff] %vm543, %v505
      %569 = vst.msk [vmem:[%s172 + $0xc8] sm:$0xff] %vm543, %v510
      %570 = vst.msk [vmem:[%s172 + $0xd0] sm:$0xff] %vm543, %v515
      %571 = vst.msk [vmem:[%s172 + $0xd8] sm:$0xff] %vm543, %v520
      %572 = vst.msk [vmem:[%s172 + $0xe0] sm:$0xff] %vm543, %v525
      %573 = vst.msk [vmem:[%s172 + $0xe8] sm:$0xff] %vm543, %v530
      %574 = vst.msk [vmem:[%s172 + $0xf0] sm:$0xff] %vm543, %v535
      %575 = vst.msk [vmem:[%s172 + $0xf8] sm:$0xff] %vm543, %v540
      %s576 = smul.u32 32, %s14
      %p577 = scmp.lt.s32.totalorder %s576, 63
      %s578 = scalar_select %p577, %s576, 63
      %s579 = smul.addr %s578, 8
      %s580 = scalar_lea.vmem %s3, %s579
      // Predicated region
      $region33: #{tpu_custom_call.1} parent=31 // pred_check
        %p581 = pneg %p100
      $region34: #{tpu_custom_call.1} parent=31 // pred_check_branch
        %583 = sbr.rel (%p581) target = $region36
      $region35: #{tpu_custom_call.1} parent=31 // pred_region
        %s584 = smul.u32 32, %s14
      $region36: #{tpu_custom_call.1} parent=31 // pred_fallthru
        _
    $region32: #{tpu_custom_call.1} parent=5 // pred_fallthru
      _
    %p585 = scmp.le.s32.totalorder 2, %s9
    // Predicated region
    $region37: #{tpu_custom_call.1} parent=5 // pred_check
      %p586 = pneg %p585
    $region38: #{tpu_custom_call.1} parent=5 // pred_check_branch
      %588 = sbr.rel (%p586) target = $region40
    $region39: #{tpu_custom_call.1} parent=5 // pred_region
      %s589 = ssub.s32 %s9, 2
      // Predicated region
      $region41: #{tpu_custom_call.1} parent=39 // pred_check
        %p590 = pneg %p106
      $region42: #{tpu_custom_call.1} parent=39 // pred_check_branch
        %592 = sbr.rel (%p590) target = $region44
      $region43: #{tpu_custom_call.1} parent=39 // pred_region
        %s593 = smul.u32 32, %s15
        %p594 = scmp.lt.s32.totalorder %s593, 63
        %s595 = scalar_select %p594, %s593, 63
        %s596 = smul.addr %s595, 8
        %s597 = scalar_lea.vmem %s3, %s596
      $region44: #{tpu_custom_call.1} parent=39 // pred_fallthru
        _
    $region40: #{tpu_custom_call.1} parent=5 // pred_fallthru
      _
  $region6: #{tpu_custom_call.1} parent=0 // loop_footer
    %s13 = sadd.s32 1, %s9
  $region7: #{tpu_custom_call.1} parent=0 // loop_footer_branch
    %8 = sbr.rel target = $region3
  $region8: #{tpu_custom_call.1} parent=0 // loop_exit
    _

</llo_original>
